<compile_context>
chip_gen: v6e
topology: v6e:2x2x1
jax: 0.10.0
libtpu: 0.0.40
codegen_flags: <defaults>
</compile_context>

<pallas_src>
import jax
import jax.numpy as jnp
from jax.experimental import pallas as pl
from jax.experimental.pallas import tpu as pltpu


def _round_up(x, m):
    return (x + m - 1) // m * m


def qnet_kernel(s_ref, a_ref, w1_ref, b1_ref, w2_ref, b2_ref,
                w3_ref, b3_ref, o_ref):
    # Fused concat in VMEM: one K=(state_dim+action_dim) dot for layer 1.
    x = jnp.concatenate([s_ref[...], a_ref[...]], axis=-1).astype(jnp.bfloat16)

    # Layer 1: Linear + ReLU (MXU, f32 accumulate).
    h1 = jnp.dot(x, w1_ref[...], preferred_element_type=jnp.float32) + b1_ref[...]
    h1 = jnp.maximum(h1, 0.0).astype(jnp.bfloat16)

    # Layer 2: Linear + ReLU (MXU, f32 accumulate). Keep h2 in f32 for the
    # VPU/XLU output reduction below.
    h2 = jnp.dot(h1, w2_ref[...], preferred_element_type=jnp.float32) + b2_ref[...]
    h2 = jnp.maximum(h2, 0.0)

    # Output layer (N=1) off the MXU: elementwise multiply + lane reduce.
    # w3_ref is the (1, H2) transposed weight row, f32.
    q = jnp.sum(h2 * w3_ref[...], axis=-1, keepdims=True) + b3_ref[...]
    o_ref[...] = q.astype(o_ref.dtype)


def _choose_tile(batch, block_m):
    """Pick the batch tile size (multiple of 16 for bf16 sublane packing)."""
    block_m = max(16, _round_up(block_m, 16))
    b16 = _round_up(batch, 16)
    if b16 <= block_m:
        # Whole batch fits in one tile. If it is large, split into 2 tiles so
        # the "parallel" grid axis gives both v7x TensorCores work.
        if b16 >= 512:
            return _round_up((b16 + 1) // 2, 16)
        return b16
    return block_m


def qnetwork_forward(state, action, params, *, block_m=1024):
    """state: (B, state_dim), action: (B, action_dim) -> (B, 1) float32."""
    w1, b1, w2, b2, w3_row, b3 = params
    state_dim = state.shape[-1]
    action_dim = action.shape[-1]

    batch = state.shape[0]
    tm = _choose_tile(batch, block_m)
    padded = _round_up(batch, tm)
    if padded != batch:
        pad = padded - batch
        state = jnp.pad(state, ((0, pad), (0, 0)))
        action = jnp.pad(action, ((0, pad), (0, 0)))
    grid = (padded // tm,)

    def act_spec(feat):
        return pl.BlockSpec((tm, feat), lambda i: (i, 0))

    def resident_spec(arr):
        # Constant block index -> loaded once, stays resident across grid steps.
        return pl.BlockSpec(arr.shape, lambda i: (0, 0))

    out = pl.pallas_call(
        qnet_kernel,
        out_shape=jax.ShapeDtypeStruct((padded, 1), jnp.float32),
        grid=grid,
        in_specs=[
            act_spec(state_dim),
            act_spec(action_dim),
            resident_spec(w1),
            resident_spec(b1),
            resident_spec(w2),
            resident_spec(b2),
            resident_spec(w3_row),
            resident_spec(b3),
        ],
        out_specs=pl.BlockSpec((tm, 1), lambda i: (i, 0)),
        compiler_params=pltpu.CompilerParams(
            dimension_semantics=("parallel",)),
    )(state, action, w1, b1, w2, b2, w3_row, b3)

    return out[:batch]


def init_params(key, state_dim, action_dim, hidden_layers):
    """nn.Linear-style uniform init.

    Hidden-layer weights stored bf16 (MXU inputs); biases f32. The final
    (H2, 1) weight is stored transposed as a (1, H2) f32 row because the
    output layer runs on the VPU, not the MXU.
    """
    h1, h2 = hidden_layers
    in_dim = state_dim + action_dim
    keys = jax.random.split(key, 6)

    def uni(k, shape, fan_in, dtype):
        bound = 1.0 / jnp.sqrt(jnp.float32(fan_in))
        return jax.random.uniform(k, shape, jnp.float32,
                                  minval=-bound, maxval=bound).astype(dtype)

    w1 = uni(keys[0], (in_dim, h1), in_dim, jnp.bfloat16)
    b1 = uni(keys[1], (1, h1), in_dim, jnp.float32)
    w2 = uni(keys[2], (h1, h2), h1, jnp.bfloat16)
    b2 = uni(keys[3], (1, h2), h1, jnp.float32)
    w3_row = uni(keys[4], (1, h2), h2, jnp.float32)   # transposed (H2, 1) weight
    b3 = uni(keys[5], (1, 1), h2, jnp.float32)
    return (w1, b1, w2, b2, w3_row, b3)


def reference_forward(state, action, params):
    """Pure-JAX f32 reference of the same MLP (same bf16-rounded weights)."""
    w1, b1, w2, b2, w3_row, b3 = params
    x = jnp.concatenate([state, action], axis=-1)
    h1 = jnp.maximum(x @ w1.astype(jnp.float32) + b1, 0.0)
    h2 = jnp.maximum(h1 @ w2.astype(jnp.float32) + b2, 0.0)
    return h2 @ w3_row.T + b3


if __name__ == "__main__":
    # Small shapes consistent with the module's forward (module default H=256).
    batch = 8
    state_dim = 12
    action_dim = 4
    hidden_layers = [256, 256]

    key = jax.random.PRNGKey(0)
    k_s, k_a, k_p = jax.random.split(key, 3)
    state = jax.random.normal(k_s, (batch, state_dim), jnp.float32)
    action = jax.random.normal(k_a, (batch, action_dim), jnp.float32)
    params = init_params(k_p, state_dim, action_dim, hidden_layers)

    q = jax.block_until_ready(qnetwork_forward(state, action, params))
    q_ref = reference_forward(state, action, params)
    assert q.shape == (batch, 1)
    assert jnp.allclose(q, q_ref, atol=2e-2, rtol=2e-2), "mismatch vs reference"

    # Exercise the multi-step grid + padding path (batch not a tile multiple).
    big = 600
    k_s2, k_a2 = jax.random.split(jax.random.PRNGKey(1))
    state2 = jax.random.normal(k_s2, (big, state_dim), jnp.float32)
    action2 = jax.random.normal(k_a2, (big, action_dim), jnp.float32)
    q2 = jax.block_until_ready(qnetwork_forward(state2, action2, params))
    q2_ref = reference_forward(state2, action2, params)
    assert q2.shape == (big, 1)
    assert jnp.allclose(q2, q2_ref, atol=2e-2, rtol=2e-2), \
        "mismatch vs reference (grid)"

    # Also force an explicit small tile so grid > 2 with padding is covered.
    q3 = jax.block_until_ready(
        qnetwork_forward(state2, action2, params, block_m=256))
    assert jnp.allclose(q3, q2_ref, atol=2e-2, rtol=2e-2), \
        "mismatch vs reference (small tile)"

    print("KERNEL_OK")
</pallas_src>

<mosaic_0001>
module attributes {stable_mosaic.version = 11 : i64} {
  func.func @qnet_kernel(%arg0: i32, %arg1: memref<16x12xf32, #tpu.memory_space<vmem>>, %arg2: memref<16x4xf32, #tpu.memory_space<vmem>>, %arg3: memref<16x256xbf16, #tpu.memory_space<vmem>>, %arg4: memref<1x256xf32, #tpu.memory_space<vmem>>, %arg5: memref<256x256xbf16, #tpu.memory_space<vmem>>, %arg6: memref<1x256xf32, #tpu.memory_space<vmem>>, %arg7: memref<1x256xf32, #tpu.memory_space<vmem>>, %arg8: memref<1x1xf32, #tpu.memory_space<vmem>>, %arg9: memref<16x1xf32, #tpu.memory_space<vmem>>) attributes {dimension_semantics = [#tpu.dimension_semantics<parallel>], iteration_bounds = array<i64: 1>, scalar_prefetch = 0 : i64, scratch_operands = 0 : i64, tpu.core_type = #tpu.core_type<tc>, window_params = [{transform_indices = @transform_0, window_bounds = array<i64: 16, 12>}, {transform_indices = @transform_1, window_bounds = array<i64: 16, 4>}, {pipeline_mode = #tpu.pipeline_mode<synchronous>, transform_indices = @transform_2, window_bounds = array<i64: 16, 256>}, {pipeline_mode = #tpu.pipeline_mode<synchronous>, transform_indices = @transform_3, window_bounds = array<i64: 1, 256>}, {pipeline_mode = #tpu.pipeline_mode<synchronous>, transform_indices = @transform_4, window_bounds = array<i64: 256, 256>}, {pipeline_mode = #tpu.pipeline_mode<synchronous>, transform_indices = @transform_5, window_bounds = array<i64: 1, 256>}, {pipeline_mode = #tpu.pipeline_mode<synchronous>, transform_indices = @transform_6, window_bounds = array<i64: 1, 256>}, {pipeline_mode = #tpu.pipeline_mode<synchronous>, transform_indices = @transform_7, window_bounds = array<i64: 1, 1>}, {transform_indices = @transform_8, window_bounds = array<i64: 16, 1>}]} {
    %c0 = arith.constant 0 : index
    %c0_0 = arith.constant 0 : index
    %0 = vector.load %arg1[%c0, %c0_0] : memref<16x12xf32, #tpu.memory_space<vmem>>, vector<16x12xf32>
    %c0_1 = arith.constant 0 : index
    %c0_2 = arith.constant 0 : index
    %1 = vector.load %arg2[%c0_1, %c0_2] : memref<16x4xf32, #tpu.memory_space<vmem>>, vector<16x4xf32>
    %2 = tpu.concatenate %0, %1 in 1 : vector<16x12xf32>, vector<16x4xf32> -> vector<16x16xf32>
    %3 = arith.truncf %2 : vector<16x16xf32> to vector<16x16xbf16>
    %c0_3 = arith.constant 0 : index
    %c0_4 = arith.constant 0 : index
    %4 = vector.load %arg3[%c0_3, %c0_4] : memref<16x256xbf16, #tpu.memory_space<vmem>>, vector<16x256xbf16>
    %cst = arith.constant dense<0.000000e+00> : vector<16x256xf32>
    %5 = tpu.matmul %3, %4, %cst {dimension_numbers = #tpu.dot_dimension_numbers<[1], [0], [0], [1], [0, 0, 1, 1], [], []>} : vector<16x16xbf16>, vector<16x256xbf16>, vector<16x256xf32> -> vector<16x256xf32>
    %c0_5 = arith.constant 0 : index
    %c0_6 = arith.constant 0 : index
    %6 = vector.load %arg4[%c0_5, %c0_6] : memref<1x256xf32, #tpu.memory_space<vmem>>, vector<1x256xf32>
    %7 = vector.broadcast %6 : vector<1x256xf32> to vector<16x256xf32>
    %8 = arith.addf %5, %7 : vector<16x256xf32>
    %cst_7 = arith.constant 0.000000e+00 : f32
    %9 = vector.broadcast %cst_7 : f32 to vector<16x256xf32>
    %10 = arith.maximumf %8, %9 : vector<16x256xf32>
    %11 = arith.truncf %10 : vector<16x256xf32> to vector<16x256xbf16>
    %c0_8 = arith.constant 0 : index
    %c0_9 = arith.constant 0 : index
    %12 = vector.load %arg5[%c0_8, %c0_9] : memref<256x256xbf16, #tpu.memory_space<vmem>>, vector<256x256xbf16>
    %cst_10 = arith.constant dense<0.000000e+00> : vector<16x256xf32>
    %13 = tpu.matmul %11, %12, %cst_10 {dimension_numbers = #tpu.dot_dimension_numbers<[1], [0], [0], [1], [0, 0, 1, 1], [], []>} : vector<16x256xbf16>, vector<256x256xbf16>, vector<16x256xf32> -> vector<16x256xf32>
    %c0_11 = arith.constant 0 : index
    %c0_12 = arith.constant 0 : index
    %14 = vector.load %arg6[%c0_11, %c0_12] : memref<1x256xf32, #tpu.memory_space<vmem>>, vector<1x256xf32>
    %15 = vector.broadcast %14 : vector<1x256xf32> to vector<16x256xf32>
    %16 = arith.addf %13, %15 : vector<16x256xf32>
    %cst_13 = arith.constant 0.000000e+00 : f32
    %17 = vector.broadcast %cst_13 : f32 to vector<16x256xf32>
    %18 = arith.maximumf %16, %17 : vector<16x256xf32>
    %c0_14 = arith.constant 0 : index
    %c0_15 = arith.constant 0 : index
    %19 = vector.load %arg7[%c0_14, %c0_15] : memref<1x256xf32, #tpu.memory_space<vmem>>, vector<1x256xf32>
    %20 = vector.broadcast %19 : vector<1x256xf32> to vector<16x256xf32>
    %21 = arith.mulf %18, %20 : vector<16x256xf32>
    %cst_16 = arith.constant dense<0.000000e+00> : vector<16xf32>
    %22 = vector.multi_reduction <add>, %21, %cst_16 [1] : vector<16x256xf32> to vector<16xf32>
    %23 = vector.shape_cast %22 : vector<16xf32> to vector<16x1xf32>
    %c0_17 = arith.constant 0 : index
    %c0_18 = arith.constant 0 : index
    %24 = vector.load %arg8[%c0_17, %c0_18] : memref<1x1xf32, #tpu.memory_space<vmem>>, vector<1x1xf32>
    %25 = vector.broadcast %24 : vector<1x1xf32> to vector<16x1xf32>
    %26 = arith.addf %23, %25 : vector<16x1xf32>
    %c0_19 = arith.constant 0 : index
    %c0_20 = arith.constant 0 : index
    %27 = vector.load %arg9[%c0_19, %c0_20] : memref<16x1xf32, #tpu.memory_space<vmem>>, vector<16x1xf32>
    tpu.vector_store %arg9[%c0_19, %c0_20], %26 {strides = array<i32>} : memref<16x1xf32, #tpu.memory_space<vmem>>, vector<16x1xf32>,
    return
  }
  func.func @transform_0(%arg0: i32) -> (i32, i32) {
    %c0_i32 = arith.constant 0 : i32
    %c0_i32_0 = arith.constant 0 : i32
    return %arg0, %c0_i32 : i32, i32
  }
  func.func @transform_1(%arg0: i32) -> (i32, i32) {
    %c0_i32 = arith.constant 0 : i32
    %c0_i32_0 = arith.constant 0 : i32
    return %arg0, %c0_i32 : i32, i32
  }
  func.func @transform_2(%arg0: i32) -> (i32, i32) {
    %c0_i32 = arith.constant 0 : i32
    %c0_i32_0 = arith.constant 0 : i32
    %c0_i32_1 = arith.constant 0 : i32
    return %c0_i32, %c0_i32_0 : i32, i32
  }
  func.func @transform_3(%arg0: i32) -> (i32, i32) {
    %c0_i32 = arith.constant 0 : i32
    %c0_i32_0 = arith.constant 0 : i32
    %c0_i32_1 = arith.constant 0 : i32
    return %c0_i32, %c0_i32_0 : i32, i32
  }
  func.func @transform_4(%arg0: i32) -> (i32, i32) {
    %c0_i32 = arith.constant 0 : i32
    %c0_i32_0 = arith.constant 0 : i32
    %c0_i32_1 = arith.constant 0 : i32
    return %c0_i32, %c0_i32_0 : i32, i32
  }
  func.func @transform_5(%arg0: i32) -> (i32, i32) {
    %c0_i32 = arith.constant 0 : i32
    %c0_i32_0 = arith.constant 0 : i32
    %c0_i32_1 = arith.constant 0 : i32
    return %c0_i32, %c0_i32_0 : i32, i32
  }
  func.func @transform_6(%arg0: i32) -> (i32, i32) {
    %c0_i32 = arith.constant 0 : i32
    %c0_i32_0 = arith.constant 0 : i32
    %c0_i32_1 = arith.constant 0 : i32
    return %c0_i32, %c0_i32_0 : i32, i32
  }
  func.func @transform_7(%arg0: i32) -> (i32, i32) {
    %c0_i32 = arith.constant 0 : i32
    %c0_i32_0 = arith.constant 0 : i32
    %c0_i32_1 = arith.constant 0 : i32
    return %c0_i32, %c0_i32_0 : i32, i32
  }
  func.func @transform_8(%arg0: i32) -> (i32, i32) {
    %c0_i32 = arith.constant 0 : i32
    %c0_i32_0 = arith.constant 0 : i32
    return %arg0, %c0_i32 : i32, i32
  }
}

</mosaic_0001>

<llo_original>
// kernel: tpu_custom_call.1
$region0: #{tpu_custom_call.1}
  #allocation0 [shape = 'u32[]', space=smem, size = 0x4, offset = 0x4, fixed_abs, tag = 'smem constant byte address 0x4 - core index']
  #allocation1 [shape = 'u32[144,128]{1,0:T(1,128)}', space=vmem, size = 0x12000, scoped, tag = 'internal scratch']
  #allocation2 [shape = 'f32[1,1]{1,0:T(1,128)S(1)}', space=vmem, size = 0x200, scoped, tag = 'scoped memory for tpu_custom_call.1']
  %s0 = inlined_call_operand.vmem [shape: f32[16,12], index: 0, kind: input, shape index: {}]
  %s1 = inlined_call_operand.vmem [shape: f32[16,4], index: 1, kind: input, shape index: {}]
  %s2 = inlined_call_operand.hbm [shape: bf16[16,256], index: 2, kind: input, shape index: {}]
  %s3 = inlined_call_operand.vmem [shape: f32[1,256], index: 3, kind: input, shape index: {}]
  %s4 = inlined_call_operand.hbm [shape: bf16[256,256], index: 4, kind: input, shape index: {}]
  %s5 = inlined_call_operand.vmem [shape: f32[1,256], index: 5, kind: input, shape index: {}]
  %s6 = inlined_call_operand.vmem [shape: f32[1,256], index: 6, kind: input, shape index: {}]
  %s7 = inlined_call_operand.<no memory space> [shape: f32[1,1], index: 7, kind: input, shape index: {}]
  %s8 = inlined_call_operand.vmem [shape: f32[16,1], index: 8, kind: output, shape index: {}]
  %s9 = sld [smem:[#allocation0]]
  $region50: #{tpu_custom_call.1} parent=0
    _
  %s11 = ssub.s32 1, %s9
  %s12 = scalar_select 0, %s11, %s9
  %v13 = vstv %s7
  %14 = vst [vmem:[#allocation2] sm:$0x1] %v13
  $region1: #{tpu_custom_call.1} parent=0
    #allocation3 [shape = 'u8[8192]{0}', space=vmem, size = 0x2000, scoped, tag = 'input window, operand 2, single buffered']
    #allocation4 [shape = 's32[1]{0}', space=sflag, size = 0x4, scoped, tag = 'scoped memory for tpu_custom_call.1']
    #allocation5 [shape = 'u8[131072]{0}', space=vmem, size = 0x20000, scoped, tag = 'input window, operand 4, single buffered']
    #allocation6 [shape = 's32[1]{0}', space=sflag, size = 0x4, scoped, tag = 'scoped memory for tpu_custom_call.1']
    %15 = vsyncpa [#allocation4], 0
    %16 = vsyncpa [#allocation6], 0
    // Predicated region
    $region2: #{tpu_custom_call.1} parent=1 // pred_check
      _
    $region3: #{tpu_custom_call.1} parent=1 // pred_check_branch
      %18 = sbr.rel (0) target = $region5
    $region4: #{tpu_custom_call.1} parent=1 // pred_region
      _
    $region5: #{tpu_custom_call.1} parent=1 // pred_fallthru
      _
    // Predicated region
    $region6: #{tpu_custom_call.1} parent=1 // pred_check
      _
    $region7: #{tpu_custom_call.1} parent=1 // pred_check_branch
      %20 = sbr.rel (0) target = $region9
    $region8: #{tpu_custom_call.1} parent=1 // pred_region
      _
    $region9: #{tpu_custom_call.1} parent=1 // pred_fallthru
      _
    // Predicated region
    $region10: #{tpu_custom_call.1} parent=1 // pred_check
      _
    $region11: #{tpu_custom_call.1} parent=1 // pred_check_branch
      %22 = sbr.rel (0) target = $region13
    $region12: #{tpu_custom_call.1} parent=1 // pred_region
      %s24 = ssub.s32 256, 256
      %25 = vsyncadd [#allocation4], %s24
      %s26 = sshll.u32 [#allocation3], 4
      %s27 = int_to_ptr.vmem [resolvable:$true] %s26
      %32 = dma.hbm_to_vmem [thread:$0]  %s2, 256, %s27, [#allocation4], 128, 128, 8
    $region13: #{tpu_custom_call.1} parent=1 // pred_fallthru
      _
    // Predicated region
    $region14: #{tpu_custom_call.1} parent=1 // pred_check
      _
    $region15: #{tpu_custom_call.1} parent=1 // pred_check_branch
      %34 = sbr.rel (0) target = $region17
    $region16: #{tpu_custom_call.1} parent=1 // pred_region
      _
    $region17: #{tpu_custom_call.1} parent=1 // pred_fallthru
      _
    // Predicated region
    $region18: #{tpu_custom_call.1} parent=1 // pred_check
      _
    $region19: #{tpu_custom_call.1} parent=1 // pred_check_branch
      %36 = sbr.rel (0) target = $region21
    $region20: #{tpu_custom_call.1} parent=1 // pred_region
      %s38 = ssub.s32 4096, 4096
      %39 = vsyncadd [#allocation6], %s38
      %s40 = sshll.u32 [#allocation5], 4
      %s41 = int_to_ptr.vmem [resolvable:$true] %s40
      %46 = dma.hbm_to_vmem [thread:$0]  %s4, 4096, %s41, [#allocation6], 128, 128, 8
    $region21: #{tpu_custom_call.1} parent=1 // pred_fallthru
      _
    // Predicated region
    $region22: #{tpu_custom_call.1} parent=1 // pred_check
      _
    $region23: #{tpu_custom_call.1} parent=1 // pred_check_branch
      %48 = sbr.rel (0) target = $region25
    $region24: #{tpu_custom_call.1} parent=1 // pred_region
      _
    $region25: #{tpu_custom_call.1} parent=1 // pred_fallthru
      _
    // Predicated region
    $region26: #{tpu_custom_call.1} parent=1 // pred_check
      _
    $region27: #{tpu_custom_call.1} parent=1 // pred_check_branch
      %50 = sbr.rel (0) target = $region29
    $region28: #{tpu_custom_call.1} parent=1 // pred_region
      _
    $region29: #{tpu_custom_call.1} parent=1 // pred_fallthru
      _
    // Predicated region
    $region30: #{tpu_custom_call.1} parent=1 // pred_check
      _
    $region31: #{tpu_custom_call.1} parent=1 // pred_check_branch
      %52 = sbr.rel (0) target = $region33
    $region32: #{tpu_custom_call.1} parent=1 // pred_region
      _
    $region33: #{tpu_custom_call.1} parent=1 // pred_fallthru
      _
    // Predicated region
    $region34: #{tpu_custom_call.1} parent=1 // pred_check
      _
    $region35: #{tpu_custom_call.1} parent=1 // pred_check_branch
      %54 = sbr.rel (0) target = $region37
    $region36: #{tpu_custom_call.1} parent=1 // pred_region
      %55 = dma.done [#allocation4], 256
    $region37: #{tpu_custom_call.1} parent=1 // pred_fallthru
      _
    // Predicated region
    $region38: #{tpu_custom_call.1} parent=1 // pred_check
      _
    $region39: #{tpu_custom_call.1} parent=1 // pred_check_branch
      %57 = sbr.rel (0) target = $region41
    $region40: #{tpu_custom_call.1} parent=1 // pred_region
      %58 = dma.done [#allocation6], 4096
    $region41: #{tpu_custom_call.1} parent=1 // pred_fallthru
      _
    %v60 = vld [vmem:[%s0] sm:$0xff]
    %v61 = vld [vmem:[%s0 + $0x8] sm:$0xff]
    %v62 = vld [vmem:[%s1] sm:$0xff]
    %v63 = vld [vmem:[%s1 + $0x8] sm:$0xff]
    %66 = vrot.lane.b32.xlu0 %v62, 12
    %v67 = vpop.permute.xlu0 %66
    %68 = vrot.lane.b32.xlu0 %v63, 12
    %v69 = vpop.permute.xlu0 %68
    %vm72 = vcmask 97280
    %v73 = vsel %vm72, %v60, %v67
    %v74 = vsel %vm72, %v61, %v69
    %v75 = vpack.c.bf16 %v74, %v73
    %v76 = vld [vmem:[#allocation3] sm:$0xff]
    %v77 = vld [vmem:[#allocation3 + $0x8] sm:$0xff]
    %v78 = vld [vmem:[%s3] sm:$0x3]
    %v80 = vlaneseq
    %v81 = vshrl.u32 %v80, 7
    %v82 = vsub.s32 0, %v81
    %v83 = vrot.slane %v78, %v82
    %v84 = vlaneseq
    %v85 = vshrl.u32 %v84, 7
    %v86 = vsub.s32 1, %v85
    %v87 = vrot.slane %v78, %v86
    %v92 = vunpack.c.l.b16 %v76
    %v93 = vunpack.c.h.b16 %v76
    %v94 = vunpack.c.l.b16 %v77
    %v95 = vunpack.c.h.b16 %v77
    %v96 = vpack.c.b16 %v94, %v92
    %v97 = vpack.c.b16 %v95, %v93
    %vm100 = vcmask 130048
    %v102 = vsel %vm100, %v75, 0
    %104 = vmatprep.subr.bf16.mxu0 0
    %105 = vmatpush1.bf16.msra.mxu0 0
    %106 = vmatprep.subr.bf16.mxu0 0
    %107 = vmatpush1.bf16.msra.mxu0 0
    %108 = vmatprep.subr.bf16.mxu0 0
    %109 = vmatpush1.bf16.msra.mxu0 0
    %110 = vmatprep.subr.bf16.mxu0 0
    %111 = vmatpush1.bf16.msra.mxu0 0
    %112 = vmatprep.subr.bf16.mxu0 0
    %113 = vmatpush1.bf16.msra.mxu0 0
    %114 = vmatprep.subr.bf16.mxu0 0
    %115 = vmatpush1.bf16.msra.mxu0 0
    %116 = vmatprep.subr.bf16.mxu0 0
    %117 = vmatpush1.bf16.msra.mxu0 0
    %118 = vmatprep.subr.bf16.mxu0 %v97
    %119 = vmatpush1.bf16.msra.mxu0 %v96
    %120 = vmatprep.subr.bf16.mxu0 0
    %121 = vmatpush2.bf16.msra.mxu0 0
    %122 = vmatprep.subr.bf16.mxu0 0
    %123 = vmatpush2.bf16.msra.mxu0 0
    %124 = vmatprep.subr.bf16.mxu0 0
    %125 = vmatpush2.bf16.msra.mxu0 0
    %126 = vmatprep.subr.bf16.mxu0 0
    %127 = vmatpush2.bf16.msra.mxu0 0
    %128 = vmatprep.subr.bf16.mxu0 0
    %129 = vmatpush2.bf16.msra.mxu0 0
    %130 = vmatprep.subr.bf16.mxu0 0
    %131 = vmatpush2.bf16.msra.mxu0 0
    %132 = vmatprep.subr.bf16.mxu0 0
    %133 = vmatpush2.bf16.msra.mxu0 0
    %134 = vmatprep.subr.bf16.mxu0 0
    %135 = vmatpush2.bf16.msra.mxu0 0
    %136 = vmatprep.mubr.bf16.mxu0 0
    %137 = vmatmul.mubr.bf16.gmra.mxu0 %v102
    %v138 = vpop.f32.mrf.mxu0
    %v139 = vadd.f32 %v83, %v138
    %v140 = vpop.f32.mrf.mxu0
    %v141 = vadd.f32 %v87, %v140
    %v142 = vpop.f32.mrf.mxu0
    %v143 = vadd.f32 %v83, %v142
    %v144 = vpop.f32.mrf.mxu0
    %v145 = vadd.f32 %v87, %v144
    %146 = vdwg.mxu0
    %v147 = vmax.f32 %v139, 0.0
    %v148 = vmax.f32 %v141, 0.0
    %v149 = vmax.f32 %v143, 0.0
    %v150 = vmax.f32 %v145, 0.0
    %v151 = vpack.c.bf16 %v149, %v147
    %v152 = vpack.c.bf16 %v150, %v148
    %v153 = vld [vmem:[#allocation5] sm:$0xff]
    %v154 = vld [vmem:[#allocation5 + $0x8] sm:$0xff]
    %v155 = vld [vmem:[#allocation5 + $0x10] sm:$0xff]
    %v156 = vld [vmem:[#allocation5 + $0x18] sm:$0xff]
    %v157 = vld [vmem:[#allocation5 + $0x20] sm:$0xff]
    %v158 = vld [vmem:[#allocation5 + $0x28] sm:$0xff]
    %v159 = vld [vmem:[#allocation5 + $0x30] sm:$0xff]
    %v160 = vld [vmem:[#allocation5 + $0x38] sm:$0xff]
    %v161 = vld [vmem:[#allocation5 + $0x40] sm:$0xff]
    %v162 = vld [vmem:[#allocation5 + $0x48] sm:$0xff]
    %v163 = vld [vmem:[#allocation5 + $0x50] sm:$0xff]
    %v164 = vld [vmem:[#allocation5 + $0x58] sm:$0xff]
    %v165 = vld [vmem:[#allocation5 + $0x60] sm:$0xff]
    %v166 = vld [vmem:[#allocation5 + $0x68] sm:$0xff]
    %v167 = vld [vmem:[#allocation5 + $0x70] sm:$0xff]
    %v168 = vld [vmem:[#allocation5 + $0x78] sm:$0xff]
    %v169 = vld [vmem:[#allocation5 + $0x80] sm:$0xff]
    %v170 = vld [vmem:[#allocation5 + $0x88] sm:$0xff]
    %v171 = vld [vmem:[#allocation5 + $0x90] sm:$0xff]
    %v172 = vld [vmem:[#allocation5 + $0x98] sm:$0xff]
    %v173 = vld [vmem:[#allocation5 + $0xa0] sm:$0xff]
    %v174 = vld [vmem:[#allocation5 + $0xa8] sm:$0xff]
    %v175 = vld [vmem:[#allocation5 + $0xb0] sm:$0xff]
    %v176 = vld [vmem:[#allocation5 + $0xb8] sm:$0xff]
    %v177 = vld [vmem:[#allocation5 + $0xc0] sm:$0xff]
    %v178 = vld [vmem:[#allocation5 + $0xc8] sm:$0xff]
    %v179 = vld [vmem:[#allocation5 + $0xd0] sm:$0xff]
    %v180 = vld [vmem:[#allocation5 + $0xd8] sm:$0xff]
    %v181 = vld [vmem:[#allocation5 + $0xe0] sm:$0xff]
    %v182 = vld [vmem:[#allocation5 + $0xe8] sm:$0xff]
    %v183 = vld [vmem:[#allocation5 + $0xf0] sm:$0xff]
    %v184 = vld [vmem:[#allocation5 + $0xf8] sm:$0xff]
    %v185 = vld [vmem:[%s5] sm:$0x3]
    %v187 = vlaneseq
    %v188 = vshrl.u32 %v187, 7
    %v189 = vsub.s32 0, %v188
    %v190 = vrot.slane %v185, %v189
    %v191 = vlaneseq
    %v192 = vshrl.u32 %v191, 7
    %v193 = vsub.s32 1, %v192
    %v194 = vrot.slane %v185, %v193
    %v229 = vunpack.c.l.b16 %v153
    %v230 = vunpack.c.h.b16 %v153
    %v231 = vunpack.c.l.b16 %v154
    %v232 = vunpack.c.h.b16 %v154
    %v233 = vunpack.c.l.b16 %v155
    %v234 = vunpack.c.h.b16 %v155
    %v235 = vunpack.c.l.b16 %v156
    %v236 = vunpack.c.h.b16 %v156
    %v237 = vunpack.c.l.b16 %v157
    %v238 = vunpack.c.h.b16 %v157
    %v239 = vunpack.c.l.b16 %v158
    %v240 = vunpack.c.h.b16 %v158
    %v241 = vunpack.c.l.b16 %v159
    %v242 = vunpack.c.h.b16 %v159
    %v243 = vunpack.c.l.b16 %v160
    %v244 = vunpack.c.h.b16 %v160
    %v245 = vunpack.c.l.b16 %v161
    %v246 = vunpack.c.h.b16 %v161
    %v247 = vunpack.c.l.b16 %v162
    %v248 = vunpack.c.h.b16 %v162
    %v249 = vunpack.c.l.b16 %v163
    %v250 = vunpack.c.h.b16 %v163
    %v251 = vunpack.c.l.b16 %v164
    %v252 = vunpack.c.h.b16 %v164
    %v253 = vunpack.c.l.b16 %v165
    %v254 = vunpack.c.h.b16 %v165
    %v255 = vunpack.c.l.b16 %v166
    %v256 = vunpack.c.h.b16 %v166
    %v257 = vunpack.c.l.b16 %v167
    %v258 = vunpack.c.h.b16 %v167
    %v259 = vunpack.c.l.b16 %v168
    %v260 = vunpack.c.h.b16 %v168
    %v261 = vunpack.c.l.b16 %v169
    %v262 = vunpack.c.h.b16 %v169
    %v263 = vunpack.c.l.b16 %v170
    %v264 = vunpack.c.h.b16 %v170
    %v265 = vunpack.c.l.b16 %v171
    %v266 = vunpack.c.h.b16 %v171
    %v267 = vunpack.c.l.b16 %v172
    %v268 = vunpack.c.h.b16 %v172
    %v269 = vunpack.c.l.b16 %v173
    %v270 = vunpack.c.h.b16 %v173
    %v271 = vunpack.c.l.b16 %v174
    %v272 = vunpack.c.h.b16 %v174
    %v273 = vunpack.c.l.b16 %v175
    %v274 = vunpack.c.h.b16 %v175
    %v275 = vunpack.c.l.b16 %v176
    %v276 = vunpack.c.h.b16 %v176
    %v277 = vunpack.c.l.b16 %v177
    %v278 = vunpack.c.h.b16 %v177
    %v279 = vunpack.c.l.b16 %v178
    %v280 = vunpack.c.h.b16 %v178
    %v281 = vunpack.c.l.b16 %v179
    %v282 = vunpack.c.h.b16 %v179
    %v283 = vunpack.c.l.b16 %v180
    %v284 = vunpack.c.h.b16 %v180
    %v285 = vunpack.c.l.b16 %v181
    %v286 = vunpack.c.h.b16 %v181
    %v287 = vunpack.c.l.b16 %v182
    %v288 = vunpack.c.h.b16 %v182
    %v289 = vunpack.c.l.b16 %v183
    %v290 = vunpack.c.h.b16 %v183
    %v291 = vunpack.c.l.b16 %v184
    %v292 = vunpack.c.h.b16 %v184
    %v293 = vpack.c.b16 %v231, %v229
    %v294 = vpack.c.b16 %v232, %v230
    %v295 = vpack.c.b16 %v235, %v233
    %v296 = vpack.c.b16 %v236, %v234
    %v297 = vpack.c.b16 %v239, %v237
    %v298 = vpack.c.b16 %v240, %v238
    %v299 = vpack.c.b16 %v243, %v241
    %v300 = vpack.c.b16 %v244, %v242
    %v301 = vpack.c.b16 %v247, %v245
    %v302 = vpack.c.b16 %v248, %v246
    %v303 = vpack.c.b16 %v251, %v249
    %v304 = vpack.c.b16 %v252, %v250
    %v305 = vpack.c.b16 %v255, %v253
    %v306 = vpack.c.b16 %v256, %v254
    %v307 = vpack.c.b16 %v259, %v257
    %v308 = vpack.c.b16 %v260, %v258
    %v309 = vpack.c.b16 %v263, %v261
    %v310 = vpack.c.b16 %v264, %v262
    %v311 = vpack.c.b16 %v267, %v265
    %v312 = vpack.c.b16 %v268, %v266
    %v313 = vpack.c.b16 %v271, %v269
    %v314 = vpack.c.b16 %v272, %v270
    %v315 = vpack.c.b16 %v275, %v273
    %v316 = vpack.c.b16 %v276, %v274
    %v317 = vpack.c.b16 %v279, %v277
    %v318 = vpack.c.b16 %v280, %v278
    %v319 = vpack.c.b16 %v283, %v281
    %v320 = vpack.c.b16 %v284, %v282
    %v321 = vpack.c.b16 %v287, %v285
    %v322 = vpack.c.b16 %v288, %v286
    %v323 = vpack.c.b16 %v291, %v289
    %v324 = vpack.c.b16 %v292, %v290
    %357 = vmatprep.subr.bf16.mxu0 %v308
    %358 = vmatpush1.bf16.msra.mxu0 %v307
    %359 = vmatprep.subr.bf16.mxu0 %v306
    %360 = vmatpush1.bf16.msra.mxu0 %v305
    %361 = vmatprep.subr.bf16.mxu0 %v304
    %362 = vmatpush1.bf16.msra.mxu0 %v303
    %363 = vmatprep.subr.bf16.mxu0 %v302
    %364 = vmatpush1.bf16.msra.mxu0 %v301
    %365 = vmatprep.subr.bf16.mxu0 %v300
    %366 = vmatpush1.bf16.msra.mxu0 %v299
    %367 = vmatprep.subr.bf16.mxu0 %v298
    %368 = vmatpush1.bf16.msra.mxu0 %v297
    %369 = vmatprep.subr.bf16.mxu0 %v296
    %370 = vmatpush1.bf16.msra.mxu0 %v295
    %371 = vmatprep.subr.bf16.mxu0 %v294
    %372 = vmatpush1.bf16.msra.mxu0 %v293
    %373 = vmatprep.subr.bf16.mxu0 %v324
    %374 = vmatpush2.bf16.msra.mxu0 %v323
    %375 = vmatprep.subr.bf16.mxu0 %v322
    %376 = vmatpush2.bf16.msra.mxu0 %v321
    %377 = vmatprep.subr.bf16.mxu0 %v320
    %378 = vmatpush2.bf16.msra.mxu0 %v319
    %379 = vmatprep.subr.bf16.mxu0 %v318
    %380 = vmatpush2.bf16.msra.mxu0 %v317
    %381 = vmatprep.subr.bf16.mxu0 %v316
    %382 = vmatpush2.bf16.msra.mxu0 %v315
    %383 = vmatprep.subr.bf16.mxu0 %v314
    %384 = vmatpush2.bf16.msra.mxu0 %v313
    %385 = vmatprep.subr.bf16.mxu0 %v312
    %386 = vmatpush2.bf16.msra.mxu0 %v311
    %387 = vmatprep.subr.bf16.mxu0 %v310
    %388 = vmatpush2.bf16.msra.mxu0 %v309
    %389 = vmatprep.mubr.bf16.mxu0 %v152
    %390 = vmatmul.mubr.bf16.gmra.mxu0 %v151
    %v391 = vpop.f32.mrf.mxu0
    %v392 = vadd.f32 %v190, %v391
    %v393 = vpop.f32.mrf.mxu0
    %v394 = vadd.f32 %v194, %v393
    %v395 = vpop.f32.mrf.mxu0
    %v396 = vadd.f32 %v190, %v395
    %v397 = vpop.f32.mrf.mxu0
    %v398 = vadd.f32 %v194, %v397
    %399 = vdwg.mxu0
    %v400 = vmax.f32 %v392, 0.0
    %v401 = vmax.f32 %v394, 0.0
    %v402 = vmax.f32 %v396, 0.0
    %v403 = vmax.f32 %v398, 0.0
    %v404 = vld [vmem:[%s6] sm:$0x3]
    %v406 = vlaneseq
    %v407 = vshrl.u32 %v406, 7
    %v408 = vsub.s32 0, %v407
    %v409 = vrot.slane %v404, %v408
    %v410 = vlaneseq
    %v411 = vshrl.u32 %v410, 7
    %v412 = vsub.s32 1, %v411
    %v413 = vrot.slane %v404, %v412
    %v416 = vmul.f32 %v400, %v409
    %v417 = vmul.f32 %v401, %v413
    %v418 = vmul.f32 %v402, %v409
    %v419 = vmul.f32 %v403, %v413
    %v420 = vadd.f32 %v416, %v417
    %421 = vadd.xlane.f32.xlu0 %v420
    %v422 = vpop.xlane.xlu0 %421
    %v423 = vadd.f32 %v418, %v419
    %424 = vadd.xlane.f32.xlu0 %v423
    %v425 = vpop.xlane.xlu0 %424
    %v426 = vld [vmem:[#allocation2] sm:$0x1]
    %v428 = vlaneseq
    %v429 = vshrl.u32 %v428, 7
    %v430 = vsub.s32 0, %v429
    %v431 = vrot.slane %v426, %v430
    %v433 = vadd.f32 %v422, %v431
    %v434 = vadd.f32 %v425, %v431
    %vm435 = vcmask 7168
    %436 = vst.msk [vmem:[%s8] sm:$0xff] %vm435, %v433
    %437 = vst.msk [vmem:[%s8 + $0x8] sm:$0xff] %vm435, %v434
    // Predicated region
    $region42: #{tpu_custom_call.1} parent=1 // pred_check
      _
    $region43: #{tpu_custom_call.1} parent=1 // pred_check_branch
      %439 = sbr.rel (0) target = $region45
    $region44: #{tpu_custom_call.1} parent=1 // pred_region
      _
    $region45: #{tpu_custom_call.1} parent=1 // pred_fallthru
      _
    // Predicated region
    $region46: #{tpu_custom_call.1} parent=1 // pred_check
      _
    $region47: #{tpu_custom_call.1} parent=1 // pred_check_branch
      %441 = sbr.rel (0) target = $region49
    $region48: #{tpu_custom_call.1} parent=1 // pred_region
      _
    $region49: #{tpu_custom_call.1} parent=1 // pred_fallthru
      _
    %442 = vsyncpa [#allocation4], 1
    %443 = vsyncpa [#allocation6], 1

</llo_original>
